<compile_context>
chip_gen: v7x
topology: tpu7x:2x2x1
jax: 0.10.0
libtpu: 0.0.40
codegen_flags: <defaults>
</compile_context>

<pallas_src>
import math
import functools

import jax
import jax.numpy as jnp
from jax.experimental import pallas as pl
from jax.experimental.pallas import tpu as pltpu


def _round_up(x, m):
    return ((x + m - 1) // m) * m


def _cdiv(a, b):
    return -(-a // b)


def _sine_kernel(x_ref, w_ref, ss_ref, o_ref, *, activation_on):
    # MXU matmul with f32 accumulation (operands may be bf16).
    acc = jnp.dot(x_ref[...], w_ref[...], preferred_element_type=jnp.float32)
    # Folded f32 epilogue: (x@W)*scale + shift == w0*((x@W + b)*gamma + beta).
    # Keep the epilogue in f32 on all generations (v5e VPU/EUP has no bf16).
    out = acc * ss_ref[0:1, :] + ss_ref[1:2, :]
    if activation_on:
        out = jnp.sin(out)
    o_ref[...] = out.astype(o_ref.dtype)


def sine_layer_forward(x, weight, bias=None, gamma=None, beta=None, *,
                       w0=1.0, activation_on=True, tm=512, tn=None,
                       matmul_dtype=jnp.bfloat16, out_dtype=None):
    """Pallas SineLayer forward.

    x:      [..., K] float32 (leading dims flattened into the row axis)
    weight: [K, N]   float32 (transposed relative to torch nn.Linear.weight)
    bias / gamma / beta: optional [N] vectors (FiLM modulation broadcast over rows)
    matmul_dtype: dtype of the MXU operands (default bf16; pass jnp.float32
                  for full accuracy).  Accumulation + epilogue stay f32.
    out_dtype: output dtype (default: x.dtype).  bf16 halves HBM writeback.
    tn: optional explicit N tile (must be a multiple of 128); default: auto.
    """
    orig_shape = x.shape
    if x.ndim != 2:
        x = x.reshape(-1, orig_shape[-1])
    M, K = x.shape
    Kw, N = weight.shape
    assert K == Kw, f"in_features mismatch: {K} vs {Kw}"

    f32 = jnp.float32
    out_dt = jnp.dtype(x.dtype if out_dtype is None else out_dtype)

    # --- Fold bias / gamma / beta / w0 into one scale + one shift vector ----
    # w0*((x@W + b)*g + beta) == (x@W)*(w0*g) + w0*(b*g + beta)
    g = jnp.ones((N,), f32) if gamma is None else jnp.asarray(gamma, f32).reshape(N)
    b = jnp.zeros((N,), f32) if bias is None else jnp.asarray(bias, f32).reshape(N)
    bt = jnp.zeros((N,), f32) if beta is None else jnp.asarray(beta, f32).reshape(N)
    scale = jnp.float32(w0) * g
    shift = jnp.float32(w0) * (b * g + bt)
    scale_shift = jnp.stack([scale, shift], axis=0)          # [2, N] packed block

    # --- MXU operand dtype (default bf16, f32 accumulate) -------------------
    mm_dtype = jnp.dtype(f32) if matmul_dtype is None else jnp.dtype(matmul_dtype)
    x_mm = x if x.dtype == mm_dtype else x.astype(mm_dtype)
    w_mm = weight if weight.dtype == mm_dtype else weight.astype(mm_dtype)
    mm_itemsize = mm_dtype.itemsize

    # Sublane packing alignment: 8 rows per vreg for 4-byte, 16 for 2-byte, 32 for 1-byte.
    align = {4: 8, 2: 16, 1: 32}.get(mm_itemsize, 8)

    # --- Physical VMEM of this generation (v7x: 64 MiB, v5e/v6e: 128 MiB) ---
    try:
        phys_vmem = int(pltpu.get_tpu_info().vmem_capacity_bytes)
    except Exception:
        phys_vmem = 64 << 20                     # conservative fallback
    vmem_cap = (phys_vmem * 3) // 4

    # --- N tile: keep full weight resident unless it threatens the budget ---
    if tn is not None:
        tn_eff = min(int(tn), N)
    else:
        w_budget = max(12 << 20, vmem_cap // 4)
        if K * N * mm_itemsize <= w_budget:
            tn_eff = N
        else:
            tn_eff = max(256, ((w_budget // (K * mm_itemsize)) // 256) * 256)
            tn_eff = min(tn_eff, N)

    # --- Row tile: big, packing-aligned, never larger than the batch --------
    tm_eff = min(int(tm), _round_up(M, align))
    tm_eff = max(align, (tm_eff // align) * align)

    num_i = _cdiv(M, tm_eff)
    num_j = _cdiv(N, tn_eff)

    # v7x has 2 TensorCores: make sure the (parallel) grid has >= 2 steps.
    if num_i * num_j < 2 and M >= 2 * align:
        tm_eff = max(align, _round_up(_cdiv(M, 2), align))
        num_i = _cdiv(M, tm_eff)

    # --- BlockSpecs: single-buffer blocks whose index never changes ---------
    x_spec = pl.BlockSpec((tm_eff, K), lambda i, j: (i, 0))
    if num_j == 1:
        w_bufs = ss_bufs = 1
        w_spec = pl.BlockSpec((K, tn_eff), lambda i, j: (0, j),
                              pipeline_mode=pl.Buffered(1))
        ss_spec = pl.BlockSpec((2, tn_eff), lambda i, j: (0, j),
                               pipeline_mode=pl.Buffered(1))
    else:
        w_bufs = ss_bufs = 2
        w_spec = pl.BlockSpec((K, tn_eff), lambda i, j: (0, j))
        ss_spec = pl.BlockSpec((2, tn_eff), lambda i, j: (0, j))
    o_spec = pl.BlockSpec((tm_eff, tn_eff), lambda i, j: (i, j))

    # --- VMEM budget (x/out double-buffered, weight per w_bufs, f32 temps) --
    vmem_need = (
        2 * tm_eff * K * mm_itemsize              # x tiles
        + w_bufs * K * tn_eff * mm_itemsize       # weight slab(s)
        + ss_bufs * 2 * tn_eff * 4                # packed scale/shift
        + 2 * tm_eff * tn_eff * out_dt.itemsize   # output tiles
        + 2 * tm_eff * tn_eff * 4                 # f32 accumulator / epilogue temps
    )
    vmem_limit = int(min(max(int(vmem_need * 1.25) + (4 << 20), 8 << 20), vmem_cap))

    cost = pl.CostEstimate(
        flops=2 * M * K * N + 2 * M * N,
        transcendentals=M * N if activation_on else 0,
        bytes_accessed=(M * K + K * N) * mm_itemsize
                       + 2 * N * 4
                       + M * N * out_dt.itemsize,
    )

    kernel = functools.partial(_sine_kernel, activation_on=bool(activation_on))

    out = pl.pallas_call(
        kernel,
        out_shape=jax.ShapeDtypeStruct((M, N), out_dt),
        grid_spec=pltpu.PrefetchScalarGridSpec(
            num_scalar_prefetch=0,
            grid=(num_i, num_j),                  # j (N axis) innermost
            in_specs=[x_spec, w_spec, ss_spec],
            out_specs=o_spec,
        ),
        compiler_params=pltpu.CompilerParams(
            dimension_semantics=("parallel", "parallel"),
            vmem_limit_bytes=vmem_limit,
        ),
        cost_estimate=cost,
    )(x_mm, w_mm, scale_shift)

    if len(orig_shape) != 2:
        out = out.reshape(*orig_shape[:-1], N)
    return out


def init_sine_layer_params(key, in_features, out_features,
                           *, w0=1.0, c=6.0, is_first=False, bias=True):
    """Deterministic init matching SineLayer.init_weigths (weight) and
    PyTorch nn.Linear default (bias).  Weight stored as [K, N]."""
    kw, kb = jax.random.split(key)
    if is_first:
        bound_w = 1.0 / in_features
    else:
        bound_w = math.sqrt(c / in_features) / w0
    weight = jax.random.uniform(kw, (in_features, out_features),
                                jnp.float32, -bound_w, bound_w)
    if bias:
        bound_b = 1.0 / math.sqrt(in_features)
        b = jax.random.uniform(kb, (out_features,), jnp.float32,
                               -bound_b, bound_b)
    else:
        b = jnp.zeros((out_features,), jnp.float32)
    return weight, b


def _reference(x, weight, bias, gamma, beta, w0, activation_on):
    out = x @ weight + bias[None, :]
    if gamma is not None:
        out = out * gamma[None, :]
    if beta is not None:
        out = out + beta[None, :]
    out = w0 * out
    return jnp.sin(out) if activation_on else out


if __name__ == "__main__":
    key = jax.random.PRNGKey(0)
    k_x, k_p, k_g, k_b, k_p2 = jax.random.split(key, 5)

    batch = 16
    in_features = 64
    out_features = 128
    w0 = 30.0

    x = jax.random.normal(k_x, (batch, in_features), jnp.float32)
    weight, bias = init_sine_layer_params(
        k_p, in_features, out_features, w0=w0, c=6.0, is_first=False, bias=True)
    gamma = jax.random.normal(k_g, (out_features,), jnp.float32)
    beta = jax.random.normal(k_b, (out_features,), jnp.float32)

    # 1) Accuracy path (f32 operands): FiLM modulation + sin activation.
    out = sine_layer_forward(x, weight, bias, gamma, beta,
                             w0=w0, activation_on=True,
                             matmul_dtype=jnp.float32)
    jax.block_until_ready(out)
    ref = _reference(x, weight, bias, gamma, beta, w0, True)
    assert jnp.allclose(out, ref, atol=1e-4, rtol=1e-5), "FiLM+sin mismatch"

    # 2) Accuracy path, no modulation, activation off (pure w0 * linear).
    out2 = sine_layer_forward(x, weight, bias, None, None,
                              w0=w0, activation_on=False,
                              matmul_dtype=jnp.float32)
    jax.block_until_ready(out2)
    ref2 = _reference(x, weight, bias, None, None, w0, False)
    assert jnp.allclose(out2, ref2, atol=1e-4, rtol=1e-5), "linear mismatch"

    # 3) Ragged batch (M=13): exercises the masked partial last block
    #    (no wrapper-side padding of x anymore).
    x3 = jax.random.normal(k_x, (13, in_features), jnp.float32)
    out3 = sine_layer_forward(x3, weight, bias, gamma, beta,
                              w0=w0, activation_on=True,
                              matmul_dtype=jnp.float32)
    jax.block_until_ready(out3)
    ref3 = _reference(x3, weight, bias, gamma, beta, w0, True)
    assert out3.shape == (13, out_features)
    assert jnp.allclose(out3, ref3, atol=1e-4, rtol=1e-5), "ragged mismatch"

    # 4) Default throughput path (bf16 MXU operands, f32 accumulate/epilogue),
    #    3-D input exercises the leading-dim flatten.  Looser tolerance: the
    #    bf16 operand quantization error is amplified by w0*gamma before sin.
    x4 = x.reshape(2, 8, in_features)
    out4 = sine_layer_forward(x4, weight, bias, gamma, beta,
                              w0=w0, activation_on=True)  # bf16 default
    jax.block_until_ready(out4)
    ref4 = _reference(x, weight, bias, gamma, beta, w0, True).reshape(
        2, 8, out_features)
    assert out4.shape == (2, 8, out_features)
    assert jnp.max(jnp.abs(out4 - ref4)) < 5e-2, "bf16 default path mismatch"

    # 5) Explicit N tiling (2-D grid path used for large weights on v7x).
    weight5, bias5 = init_sine_layer_params(
        k_p2, in_features, 256, w0=w0, c=6.0, is_first=False, bias=True)
    out5 = sine_layer_forward(x, weight5, bias5, None, None,
                              w0=w0, activation_on=True,
                              matmul_dtype=jnp.float32, tn=128)
    jax.block_until_ready(out5)
    ref5 = _reference(x, weight5, bias5, None, None, w0, True)
    assert jnp.allclose(out5, ref5, atol=1e-4, rtol=1e-5), "N-tiled mismatch"

    print("KERNEL_OK")
</pallas_src>

<mosaic_0001>
module attributes {stable_mosaic.version = 11 : i64} {
  func.func @_sine_kernel(%arg0: i32, %arg1: i32, %arg2: memref<8x64xf32, #tpu.memory_space<vmem>>, %arg3: memref<64x128xf32, #tpu.memory_space<vmem>>, %arg4: memref<2x128xf32, #tpu.memory_space<vmem>>, %arg5: memref<8x128xf32, #tpu.memory_space<vmem>>) attributes {dimension_semantics = [#tpu.dimension_semantics<parallel>, #tpu.dimension_semantics<parallel>], iteration_bounds = array<i64: 2, 1>, scalar_prefetch = 0 : i64, scratch_operands = 0 : i64, tpu.core_type = #tpu.core_type<tc>, window_params = [{transform_indices = @transform_0, window_bounds = array<i64: 8, 64>}, {pipeline_mode = #tpu.pipeline_mode<synchronous>, transform_indices = @transform_1, window_bounds = array<i64: 64, 128>}, {pipeline_mode = #tpu.pipeline_mode<synchronous>, transform_indices = @transform_2, window_bounds = array<i64: 2, 128>}, {transform_indices = @transform_3, window_bounds = array<i64: 8, 128>}]} {
    %c0 = arith.constant 0 : index
    %c0_0 = arith.constant 0 : index
    %0 = vector.load %arg2[%c0, %c0_0] : memref<8x64xf32, #tpu.memory_space<vmem>>, vector<8x64xf32>
    %c0_1 = arith.constant 0 : index
    %c0_2 = arith.constant 0 : index
    %1 = vector.load %arg3[%c0_1, %c0_2] : memref<64x128xf32, #tpu.memory_space<vmem>>, vector<64x128xf32>
    %cst = arith.constant dense<0.000000e+00> : vector<8x128xf32>
    %2 = tpu.matmul %0, %1, %cst {dimension_numbers = #tpu.dot_dimension_numbers<[1], [0], [0], [1], [0, 0, 1, 1], [], []>} : vector<8x64xf32>, vector<64x128xf32>, vector<8x128xf32> -> vector<8x128xf32>
    %c0_3 = arith.constant 0 : index
    %c0_4 = arith.constant 0 : index
    %3 = vector.load %arg4[%c0_3, %c0_4] : memref<2x128xf32, #tpu.memory_space<vmem>>, vector<1x128xf32>
    %4 = vector.broadcast %3 : vector<1x128xf32> to vector<8x128xf32>
    %5 = arith.mulf %2, %4 : vector<8x128xf32>
    %c1 = arith.constant 1 : index
    %c0_5 = arith.constant 0 : index
    %6 = vector.load %arg4[%c1, %c0_5] : memref<2x128xf32, #tpu.memory_space<vmem>>, vector<1x128xf32>
    %7 = vector.broadcast %6 : vector<1x128xf32> to vector<8x128xf32>
    %8 = arith.addf %5, %7 : vector<8x128xf32>
    %9 = math.sin %8 : vector<8x128xf32>
    %c0_6 = arith.constant 0 : index
    %c0_7 = arith.constant 0 : index
    %10 = vector.load %arg5[%c0_6, %c0_7] : memref<8x128xf32, #tpu.memory_space<vmem>>, vector<8x128xf32>
    tpu.vector_store %arg5[%c0_6, %c0_7], %9 {strides = array<i32>} : memref<8x128xf32, #tpu.memory_space<vmem>>, vector<8x128xf32>,
    return
  }
  func.func @transform_0(%arg0: i32, %arg1: i32) -> (i32, i32) {
    %c0_i32 = arith.constant 0 : i32
    %c0_i32_0 = arith.constant 0 : i32
    return %arg0, %c0_i32 : i32, i32
  }
  func.func @transform_1(%arg0: i32, %arg1: i32) -> (i32, i32) {
    %c0_i32 = arith.constant 0 : i32
    %c0_i32_0 = arith.constant 0 : i32
    return %c0_i32, %arg1 : i32, i32
  }
  func.func @transform_2(%arg0: i32, %arg1: i32) -> (i32, i32) {
    %c0_i32 = arith.constant 0 : i32
    %c0_i32_0 = arith.constant 0 : i32
    return %c0_i32, %arg1 : i32, i32
  }
  func.func @transform_3(%arg0: i32, %arg1: i32) -> (i32, i32) {
    %c0_i32 = arith.constant 0 : i32
    return %arg0, %arg1 : i32, i32
  }
}

</mosaic_0001>

<llo_original>
// kernel: tpu_custom_call.1
$region0: #{tpu_custom_call.1}
  #allocation0 [shape = 'u32[]', space=smem, size = 0x4, offset = 0x4, fixed_abs, tag = 'smem constant byte address 0x4 - core index']
  #allocation1 [shape = 'u32[144,128]{1,0:T(1,128)}', space=vmem, size = 0x12000, scoped, tag = 'internal scratch']
  %s0 = inlined_call_operand.hbm [shape: f32[16,64], index: 0, kind: input, shape index: {}]
  %s1 = inlined_call_operand.hbm [shape: f32[64,128], index: 1, kind: input, shape index: {}]
  %s2 = inlined_call_operand.vmem [shape: f32[2,128], index: 2, kind: input, shape index: {}]
  %s3 = inlined_call_operand.hbm [shape: f32[16,128], index: 3, kind: output, shape index: {}]
  %s4 = sld [smem:[#allocation0]]
  $region53: #{tpu_custom_call.1} parent=0
    _
  %s6 = ssub.s32 1, %s4
  %s7 = scalar_select 0, %s6, %s4
  $region1: #{tpu_custom_call.1} parent=0
    #allocation2 [shape = 'u8[8192]{0}', space=vmem, size = 0x2000, scoped, tag = 'input window, operand 0']
    #allocation3 [shape = 's32[2]{0}', space=sflag, size = 0x8, scoped, tag = 'scoped memory for tpu_custom_call.1']
    #allocation4 [shape = 's32[2]{0}', space=sflag, size = 0x8, scoped, tag = 'scoped memory for tpu_custom_call.1']
    #allocation5 [shape = 'u8[32768]{0}', space=vmem, size = 0x8000, scoped, tag = 'input window, operand 1, single buffered']
    #allocation6 [shape = 's32[1]{0}', space=sflag, size = 0x4, scoped, tag = 'scoped memory for tpu_custom_call.1']
    #allocation7 [shape = 'u8[8192]{0}', space=vmem, size = 0x2000, scoped, tag = 'output window, operand 0']
    %8 = vsyncpa [#allocation3], 0
    %s9 = scalar_lea.sflag [#allocation3], 1
    %10 = vsyncpa %s9, 0
    %11 = vsyncpa [#allocation6], 0
    %12 = vsyncpa [#allocation4], 0
    %s13 = scalar_lea.sflag [#allocation4], 1
    %14 = vsyncpa %s13, 0
    loop: start=0, step=1, limit=4
    $region2: #{tpu_custom_call.1} parent=1 // loop_pre_header
      _
    $region3: #{tpu_custom_call.1} parent=1 // loop_header
      %s16 = sphi 0, %s20
      %p17 = scmp.ge.s32.totalorder %s16, 4
      %s23 = sphi 0, %s35
      %s24 = sphi 0, %s31
      %s25 = sphi 0, %s23
      %s26 = sphi 0, %s24
      %s27 = sphi 0, %s25
      %s28 = sphi 0, %s26
      %s38 = sphi 0, %s40
      %s41 = sphi 0, %s38
      %s42 = sphi 0, %s41
      %s58 = sphi 0, %s42
      %s64 = sphi 0, %s66
      %s67 = sphi 0, %s64
      %s68 = sphi 0, %s67
      %s84 = sphi 0, %s68
      %s90 = sphi 0, %s92
      %s93 = sphi 0, %s90
      %s94 = sphi 0, %s93
      %s110 = sphi 0, %s94
      %s118 = sphi 0, %s120
      %s121 = sphi 0, %s118
      %s122 = sphi 0, %s121
      %s138 = sphi 0, %s122
    $region4: #{tpu_custom_call.1} parent=1 // loop_header_branch
      %19 = sbr.rel (%p17) target = $region8
    $region5: #{tpu_custom_call.1} parent=1 // loop_body
      %s21 = ssub.s32 %s16, 1
      %s22 = ssub.s32 %s16, 2
      %s29 = sadd.s32 1, %s24
      %p30 = scmp.ge.s32.totalorder %s29, 1
      %s31 = scalar_select %p30, 0, %s29
      %s32 = sadd.s32 1, %s23
      %s33 = scalar_select %p30, %s32, %s23
      %p34 = scmp.ge.s32.totalorder %s33, 2
      %s35 = scalar_select %p34, 0, %s33
      %s36 = ssub.s32 %s23, %s35
      %p37 = scmp.eq.s32.totalorder %s36, 0
      %s39 = sadd.s32 %s38, 1
      %s40 = scalar_select %p37, %s38, %s39
      %p43 = pneg %p37
      %p44 = scmp.eq.s32.totalorder %s16, 1
      %p45 = por %p43, %p44
      %p46 = scmp.ne.s32.totalorder %s38, %s41
      %p47 = scmp.eq.s32.totalorder %s16, 0
      %p48 = por %p46, %p47
      %p49 = scmp.ne.s32.totalorder %s38, %s41
      %p50 = scmp.eq.s32.totalorder %s21, 1
      %p51 = por %p49, %p50
      %p52 = scmp.ne.s32.totalorder %s41, %s42
      %p53 = scmp.eq.s32.totalorder %s21, 0
      %p54 = por %p52, %p53
      %p55 = scmp.ne.s32.totalorder %s41, %s42
      %p56 = scmp.eq.s32.totalorder %s22, 1
      %p57 = por %p55, %p56
      %p59 = scmp.ne.s32.totalorder %s42, %s58
      %p60 = scmp.eq.s32.totalorder %s22, 0
      %p61 = por %p59, %p60
      %s62 = ssub.s32 %s24, %s31
      %p63 = scmp.eq.s32.totalorder %s62, 0
      %s65 = sadd.s32 %s64, 1
      %s66 = scalar_select %p63, %s64, %s65
      %p69 = pneg %p63
      %p70 = scmp.eq.s32.totalorder %s16, 1
      %p71 = por %p69, %p70
      %p72 = scmp.ne.s32.totalorder %s64, %s67
      %p73 = scmp.eq.s32.totalorder %s16, 0
      %p74 = por %p72, %p73
      %p75 = scmp.ne.s32.totalorder %s64, %s67
      %p76 = scmp.eq.s32.totalorder %s21, 1
      %p77 = por %p75, %p76
      %p78 = scmp.ne.s32.totalorder %s67, %s68
      %p79 = scmp.eq.s32.totalorder %s21, 0
      %p80 = por %p78, %p79
      %p81 = scmp.ne.s32.totalorder %s67, %s68
      %p82 = scmp.eq.s32.totalorder %s22, 1
      %p83 = por %p81, %p82
      %p85 = scmp.ne.s32.totalorder %s68, %s84
      %p86 = scmp.eq.s32.totalorder %s22, 0
      %p87 = por %p85, %p86
      %s88 = ssub.s32 %s24, %s31
      %p89 = scmp.eq.s32.totalorder %s88, 0
      %s91 = sadd.s32 %s90, 1
      %s92 = scalar_select %p89, %s90, %s91
      %p95 = pneg %p89
      %p96 = scmp.eq.s32.totalorder %s16, 1
      %p97 = por %p95, %p96
      %p98 = scmp.ne.s32.totalorder %s90, %s93
      %p99 = scmp.eq.s32.totalorder %s16, 0
      %p100 = por %p98, %p99
      %p101 = scmp.ne.s32.totalorder %s90, %s93
      %p102 = scmp.eq.s32.totalorder %s21, 1
      %p103 = por %p101, %p102
      %p104 = scmp.ne.s32.totalorder %s93, %s94
      %p105 = scmp.eq.s32.totalorder %s21, 0
      %p106 = por %p104, %p105
      %p107 = scmp.ne.s32.totalorder %s93, %s94
      %p108 = scmp.eq.s32.totalorder %s22, 1
      %p109 = por %p107, %p108
      %p111 = scmp.ne.s32.totalorder %s94, %s110
      %p112 = scmp.eq.s32.totalorder %s22, 0
      %p113 = por %p111, %p112
      %s114 = ssub.s32 %s23, %s35
      %s115 = ssub.s32 %s24, %s31
      %s116 = sor.u32 %s114, %s115
      %p117 = scmp.eq.s32.totalorder %s116, 0
      %s119 = sadd.s32 %s118, 1
      %s120 = scalar_select %p117, %s118, %s119
      %p123 = pneg %p117
      %p124 = scmp.eq.s32.totalorder %s16, 1
      %p125 = por %p123, %p124
      %p126 = scmp.ne.s32.totalorder %s118, %s121
      %p127 = scmp.eq.s32.totalorder %s16, 0
      %p128 = por %p126, %p127
      %p129 = scmp.ne.s32.totalorder %s118, %s121
      %p130 = scmp.eq.s32.totalorder %s21, 1
      %p131 = por %p129, %p130
      %p132 = scmp.ne.s32.totalorder %s121, %s122
      %p133 = scmp.eq.s32.totalorder %s21, 0
      %p134 = por %p132, %p133
      %p135 = scmp.ne.s32.totalorder %s121, %s122
      %p136 = scmp.eq.s32.totalorder %s22, 1
      %p137 = por %p135, %p136
      %p139 = scmp.ne.s32.totalorder %s122, %s138
      %p140 = scmp.eq.s32.totalorder %s22, 0
      %p141 = por %p139, %p140
      %p142 = scmp.le.s32.totalorder 1, %s16
      %p143 = scmp.lt.s32.totalorder %s16, 3
      %p144 = pnand %p142, %p143
      %p145 = pneg %p144
      // Predicated region
      $region9: #{tpu_custom_call.1} parent=5 // pred_check
        _
      $region10: #{tpu_custom_call.1} parent=5 // pred_check_branch
        %147 = sbr.rel (%p144) target = $region12
      $region11: #{tpu_custom_call.1} parent=5 // pred_region
        %s148 = ssub.s32 %s16, 1
        // Predicated region
        $region13: #{tpu_custom_call.1} parent=11 // pred_check
          %p149 = pneg %p80
        $region14: #{tpu_custom_call.1} parent=11 // pred_check_branch
          %151 = sbr.rel (%p149) target = $region16
        $region15: #{tpu_custom_call.1} parent=11 // pred_region
          %s153 = ssub.s32 1024, 1024
          %154 = vsyncadd [#allocation6], %s153
          %s155 = smul.addr %s26, 128
          %s156 = scalar_lea.hbm %s1, %s155
          %s157 = sshll.u32 [#allocation5], 4
          %s158 = int_to_ptr.vmem [resolvable:$true] %s157
          %163 = dma.hbm_to_vmem [thread:$0]  %s156, 1024, %s158, [#allocation6], 128, 128, 8
        $region16: #{tpu_custom_call.1} parent=11 // pred_fallthru
          _
        // Predicated region
        $region17: #{tpu_custom_call.1} parent=11 // pred_check
          %p164 = pneg %p106
        $region18: #{tpu_custom_call.1} parent=11 // pred_check_branch
          %166 = sbr.rel (%p164) target = $region20
        $region19: #{tpu_custom_call.1} parent=11 // pred_region
          %p167 = scmp.lt.s32.totalorder %s26, 0
          %s168 = scalar_select %p167, %s26, 0
          %s169 = smul.addr %s168, 2
          %s170 = scalar_lea.vmem %s2, %s169
        $region20: #{tpu_custom_call.1} parent=11 // pred_fallthru
          _
      $region12: #{tpu_custom_call.1} parent=5 // pred_fallthru
        _
      %p171 = scmp.lt.s32.totalorder %s16, 2
      // Predicated region
      $region21: #{tpu_custom_call.1} parent=5 // pred_check
        %p172 = pneg %p171
      $region22: #{tpu_custom_call.1} parent=5 // pred_check_branch
        %174 = sbr.rel (%p172) target = $region24
      $region23: #{tpu_custom_call.1} parent=5 // pred_region
        // Predicated region
        $region25: #{tpu_custom_call.1} parent=23 // pred_check
          %p175 = pneg %p48
        $region26: #{tpu_custom_call.1} parent=23 // pred_check_branch
          %177 = sbr.rel (%p175) target = $region28
        $region27: #{tpu_custom_call.1} parent=23 // pred_region
          %s178 = sand.u32 %s38, 1
          %s179 = scalar_lea.sflag [#allocation3], %s178
          %s180 = sand.u32 %s38, 1
          %s181 = smul.addr %s180, 8
          %s182 = scalar_lea.vmem [#allocation2], %s181
          %s184 = ssub.s32 128, 128
          %185 = vsyncadd %s179, %s184
          %s186 = smul.addr %s23, 128
          %s187 = scalar_lea.hbm %s0, %s186
          %s189 = sshll.u32 %s182, 4
          %s190 = int_to_ptr.vmem [resolvable:$true] %s189
          %192 = dma.hbm_to_vmem [thread:$0]  %s187, 128, %s190, %s179
        $region28: #{tpu_custom_call.1} parent=23 // pred_fallthru
          _
      $region24: #{tpu_custom_call.1} parent=5 // pred_fallthru
        _
      %p193 = scmp.le.s32.totalorder 1, %s16
      %p194 = scmp.lt.s32.totalorder %s16, 3
      %p195 = pnand %p193, %p194
      %p196 = pneg %p195
      // Predicated region
      $region29: #{tpu_custom_call.1} parent=5 // pred_check
        _
      $region30: #{tpu_custom_call.1} parent=5 // pred_check_branch
        %198 = sbr.rel (%p195) target = $region32
      $region31: #{tpu_custom_call.1} parent=5 // pred_region
        %s199 = ssub.s32 %s16, 1
        %s200 = sand.u32 %s41, 1
        %s201 = scalar_lea.sflag [#allocation3], %s200
        %s202 = sand.u32 %s41, 1
        %s203 = smul.addr %s202, 8
        %s204 = scalar_lea.vmem [#allocation2], %s203
        // Predicated region
        $region33: #{tpu_custom_call.1} parent=31 // pred_check
          %p205 = pneg %p54
        $region34: #{tpu_custom_call.1} parent=31 // pred_check_branch
          %207 = sbr.rel (%p205) target = $region36
        $region35: #{tpu_custom_call.1} parent=31 // pred_region
          %208 = dma.done %s201, 128
        $region36: #{tpu_custom_call.1} parent=31 // pred_fallthru
          _
        // Predicated region
        $region37: #{tpu_custom_call.1} parent=31 // pred_check
          %p209 = pneg %p80
        $region38: #{tpu_custom_call.1} parent=31 // pred_check_branch
          %211 = sbr.rel (%p209) target = $region40
        $region39: #{tpu_custom_call.1} parent=31 // pred_region
          %212 = dma.done [#allocation6], 1024
        $region40: #{tpu_custom_call.1} parent=31 // pred_fallthru
          _
        %s213 = sand.u32 %s41, 1
        %s214 = scalar_lea.sflag [#allocation3], %s213
        %s215 = sand.u32 %s41, 1
        %s216 = smul.addr %s215, 8
        %s217 = scalar_lea.vmem [#allocation2], %s216
        %p218 = pneg %p54
        %p219 = pneg %p51
        %p220 = pneg %p80
        %p221 = pneg %p77
        %p222 = scmp.lt.s32.totalorder %s26, 0
        %s223 = scalar_select %p222, %s26, 0
        %s224 = smul.addr %s223, 2
        %s225 = scalar_lea.vmem %s2, %s224
        %p226 = pneg %p106
        %p227 = pneg %p103
        %p228 = pneg %p134
        %p229 = pneg %p131
        %s230 = sand.u32 %s121, 1
        %s231 = scalar_lea.sflag [#allocation4], %s230
        %s232 = sand.u32 %s121, 1
        %s233 = smul.addr %s232, 8
        %s234 = scalar_lea.vmem [#allocation7], %s233
        %p235 = scmp.lt.s32.totalorder %s26, 0
        %s236 = scalar_select %p235, %s26, 0
        %s237 = smul.addr %s236, 2
        %s238 = scalar_lea.vmem %s2, %s237
        %v239 = vld [vmem:[%s204] sm:$0xff]
        %v240 = vld [vmem:[#allocation5] sm:$0xff]
        %v241 = vld [vmem:[#allocation5 + $0x8] sm:$0xff]
        %v242 = vld [vmem:[#allocation5 + $0x10] sm:$0xff]
        %v243 = vld [vmem:[#allocation5 + $0x18] sm:$0xff]
        %v244 = vld [vmem:[#allocation5 + $0x20] sm:$0xff]
        %v245 = vld [vmem:[#allocation5 + $0x28] sm:$0xff]
        %v246 = vld [vmem:[#allocation5 + $0x30] sm:$0xff]
        %v247 = vld [vmem:[#allocation5 + $0x38] sm:$0xff]
        %vm248 = vcmask 523264
        %v250 = vsel %vm248, %v239, 0
        %252 = vmatprep.subr.mxu0 0.0
        %253 = vmatpush1.msra.mxu0 %v240
        %254 = vmatprep.subr.mxu0 0.0
        %255 = vmatpush1.msra.mxu0 %v241
        %256 = vmatprep.subr.mxu0 0.0
        %257 = vmatpush1.msra.mxu0 %v242
        %258 = vmatprep.subr.mxu0 0.0
        %259 = vmatpush1.msra.mxu0 %v243
        %260 = vmatprep.subr.mxu0 0.0
        %261 = vmatpush1.msra.mxu0 %v244
        %262 = vmatprep.subr.mxu0 0.0
        %263 = vmatpush1.msra.mxu0 %v245
        %264 = vmatprep.subr.mxu0 0.0
        %265 = vmatpush1.msra.mxu0 %v246
        %266 = vmatprep.subr.mxu0 0.0
        %267 = vmatpush1.msra.mxu0 %v247
        %268 = vmatprep.subr.mxu0 0.0
        %269 = vmatpush1.msra.mxu0 0.0
        %270 = vmatprep.subr.mxu0 0.0
        %271 = vmatpush1.msra.mxu0 0.0
        %272 = vmatprep.subr.mxu0 0.0
        %273 = vmatpush1.msra.mxu0 0.0
        %274 = vmatprep.subr.mxu0 0.0
        %275 = vmatpush1.msra.mxu0 0.0
        %276 = vmatprep.subr.mxu0 0.0
        %277 = vmatpush1.msra.mxu0 0.0
        %278 = vmatprep.subr.mxu0 0.0
        %279 = vmatpush1.msra.mxu0 0.0
        %280 = vmatprep.subr.mxu0 0.0
        %281 = vmatpush1.msra.mxu0 0.0
        %282 = vmatprep.subr.mxu0 0.0
        %283 = vmatpush1.msra.mxu0 0.0
        %284 = vmatprep.subr.mxu0 0.0
        %285 = vmatpush1.msra.mxu0 0.0
        %286 = vmatprep.subr.mxu0 0.0
        %287 = vmatpush1.msra.mxu0 0.0
        %288 = vmatprep.subr.mxu0 0.0
        %289 = vmatpush1.msra.mxu0 0.0
        %290 = vmatprep.subr.mxu0 0.0
        %291 = vmatpush1.msra.mxu0 0.0
        %292 = vmatprep.subr.mxu0 0.0
        %293 = vmatpush1.msra.mxu0 0.0
        %294 = vmatprep.subr.mxu0 0.0
        %295 = vmatpush1.msra.mxu0 0.0
        %296 = vmatprep.subr.mxu0 0.0
        %297 = vmatpush1.msra.mxu0 0.0
        %298 = vmatprep.subr.mxu0 0.0
        %299 = vmatpush1.msra.mxu0 0.0
        %300 = vmatprep.subr.mxu0 0.0
        %301 = vmatpush1.msra.mxu0 0.0
        %302 = vmatprep.subr.mxu0 0.0
        %303 = vmatpush1.msra.mxu0 0.0
        %304 = vmatprep.subr.mxu0 0.0
        %305 = vmatpush1.msra.mxu0 0.0
        %306 = vmatprep.subr.mxu0 0.0
        %307 = vmatpush1.msra.mxu0 0.0
        %308 = vmatprep.subr.mxu0 0.0
        %309 = vmatpush1.msra.mxu0 0.0
        %310 = vmatprep.subr.mxu0 0.0
        %311 = vmatpush1.msra.mxu0 0.0
        %312 = vmatprep.subr.mxu0 0.0
        %313 = vmatpush1.msra.mxu0 0.0
        %314 = vmatprep.subr.mxu0 0.0
        %315 = vmatpush1.msra.mxu0 0.0
        %316 = vmatprep.mubr.f32.mxu0 0.0
        %317 = vmatmul.mubr.f32.gmra.mrb[0].mxu0 %v250
        %v318 = vpop.f32.mrb[0].mxu0
        %v319 = vadd.f32 0.0, %v318
        %v320 = vpop.f32.mrb[0].mxu0
        %321 = vdwg.mxu0
        %v322 = vld [vmem:[%s238] sm:$0x1]
        %v323 = vlaneseq
        %v324 = vshrl.u32 %v323, 7
        %v325 = vsub.s32 0, %v324
        %v326 = vrot.slane %v322, %v325
        %v327 = vmul.f32 %v319, %v326
        %v328 = vld [vmem:[%s238 + $0x1] sm:$0x1]
        %v329 = vlaneseq
        %v330 = vshrl.u32 %v329, 7
        %v331 = vsub.s32 0, %v330
        %v332 = vrot.slane %v328, %v331
        %v333 = vadd.f32 %v327, %v332
        %v334 = vand.u32 2147483647, %v333
        %vm335 = vcmp.le.f32.partialorder %v334, 0.7853982
        %vm336 = vcmp.lt.s32.totalorder %v333, 0
        %v337 = vand.u32 %v333, 2139095040
        %v338 = vshrl.u32 %v337, 23
        %v339 = vsub.s32 %v338, 127
        %v340 = vand.u32 2147483647, %v333
        %v341 = vand.u32 %v340, 8388607
        %v342 = vor.u32 %v341, 8388608
        %v343 = vsub.s32 0, %v342
        %v344 = vadd.s32 %v339, 1
        %vm345 = vcmp.gt.s32.totalorder %v344, 0
        %v346 = vsel %vm345, %v344, 0
        %v347 = vshrl.u32 %v346, 5
        %v348 = vand.u32 %v346, 31
        %v349 = vsub.s32 32, %v348
        %v350 = vshrl.u32 683565275, %v349
        %v351 = vshll.u32 683565275, %v348
        %v352 = vshrl.u32 2475754826, %v349
        %v353 = vor.u32 %v351, %v352
        %v354 = vshll.u32 2475754826, %v348
        %v355 = vshrl.u32 2131351028, %v349
        %v356 = vor.u32 %v354, %v355
        %v357 = vshll.u32 2131351028, %v348
        %v358 = vshrl.u32 2102212464, %v349
        %v359 = vor.u32 %v357, %v358
        %v360 = vshll.u32 2102212464, %v348
        %v361 = vshrl.u32 920167782, %v349
        %v362 = vor.u32 %v360, %v361
        %v363 = vshll.u32 920167782, %v348
        %v364 = vshrl.u32 1326507024, %v349
        %v365 = vor.u32 %v363, %v364
        %vm366 = vcmp.lt.s32.totalorder %v347, 1
        %vm367 = vcmp.lt.s32.totalorder %v347, 2
        %vm368 = vcmp.lt.s32.totalorder %v347, 3
        %vm369 = vcmp.lt.s32.totalorder %v347, 4
        %v370 = vsel %vm366, %v350, %v353
        %v371 = vsel %vm369, %v359, 2102212464
        %v372 = vsel %vm368, %v356, %v371
        %v373 = vsel %vm367, %v370, %v372
        %v374 = vsel %vm366, %v353, %v356
        %v375 = vsel %vm369, %v362, 920167782
        %v376 = vsel %vm368, %v359, %v375
        %v377 = vsel %vm367, %v374, %v376
        %v378 = vsel %vm366, %v356, %v359
        %v379 = vsel %vm369, %v365, 1326507024
        %v380 = vsel %vm368, %v362, %v379
        %v381 = vsel %vm367, %v378, %v380
        %v382 = vshll.u32 %v342, 8
        %v383 = vmul.u32.u64.compose %v382, %v381
        %v384 = vextract.low.u32 %v383
        %v385 = vextract.high.u32 %v383
        %v386 = vmul.u32.u64.compose %v382, %v377
        %v387 = vextract.low.u32 %v386
        %v388 = vextract.high.u32 %v386
        %v389 = vmul.u32 %v382, %v373
        %v390 = vadd.s32 %v385, %v387
        %vm391 = vc.u32 %v385, %v387
        %v392 = vadd.s32 %v388, 1
        %v393 = vsel %vm391, %v392, %v388
        %v394 = vadd.s32 %v389, %v393
        %v395 = vadd.s32 %v394, 536870912
        %v396 = vshrl.u32 %v395, 30
        %v397 = vshll.u32 %v396, 30
        %v398 = vsub.s32 %v394, %v397
        %vm399 = vcmp.lt.s32.totalorder %v398, 0
        %v400 = vsub.s32 0, %v398
        %v401 = vsel %vm399, %v400, %v398
        %v402 = vclz %v401
        %v403 = vsub.s32 %v402, 2
        %vm404 = vcmp.gt.s32.totalorder 0, %v403
        %v405 = vsel %vm404, 0, %v403
        %v406 = vsub.s32 32, %v405
        %v407 = vshll.u32 %v398, %v405
        %v408 = vshrl.u32 %v390, %v406
        %v409 = vor.u32 %v407, %v408
        %v410 = vsub.s32 4294967266, %v405
        %v411 = vadd.s32 %v410, 127
        %v412 = vshll.u32 %v411, 23
        %v413 = vor.u32 4788187, %v412
        %v414 = vand.u32 2147483647, %v413
        %v416 = vcvt.s32.f32 %v409
        %v417 = vmul.f32 %v416, %v414
        %v418 = vxor.u32 %v417, 2147483648
        %v419 = vsel %vm336, %v418, %v417
        %v420 = vsub.s32 4, %v396
        %v421 = vsel %vm336, %v420, %v396
        %v422 = vsel %vm335, %v333, %v419
        %v423 = vsel %vm335, 0, %v421
        %v424 = vcosq.f32.pop %v422
        %v425 = vsinq.f32.pop %v422
        %vm426 = vweird.f32 %v333
        %v427 = vadd.s32 %v423, 3
        %v428 = vand.u32 %v427, 3
        %vm429 = vcmp.lt.s32.totalorder %v428, 2
        %vm430 = vcmp.eq.s32.totalorder %v428, 0
        %v431 = vxor.u32 %v425, 2147483648
        %v432 = vsel %vm430, %v424, %v431
        %vm433 = vcmp.eq.s32.totalorder %v428, 2
        %v434 = vxor.u32 %v424, 2147483648
        %v435 = vsel %vm433, %v434, %v425
        %v436 = vsel %vm429, %v432, %v435
        %v437 = vsel %vm426, nan, %v436
        %438 = vst [vmem:[%s234] sm:$0xff] %v437
        %s439 = sand.u32 %s121, 1
        %s440 = scalar_lea.sflag [#allocation4], %s439
        %s441 = sand.u32 %s121, 1
        %s442 = smul.addr %s441, 8
        %s443 = scalar_lea.vmem [#allocation7], %s442
        // Predicated region
        $region41: #{tpu_custom_call.1} parent=31 // pred_check
          %p444 = pneg %p131
        $region42: #{tpu_custom_call.1} parent=31 // pred_check_branch
          %446 = sbr.rel (%p444) target = $region44
        $region43: #{tpu_custom_call.1} parent=31 // pred_region
          %s448 = ssub.s32 128, 128
          %449 = vsyncadd %s440, %s448
          %s450 = sadd.s32 %s26, %s25
          %s451 = smul.addr %s450, 128
          %s452 = scalar_lea.hbm %s3, %s451
          %s454 = sshll.u32 %s443, 4
          %s455 = int_to_ptr.vmem [resolvable:$true] %s454
          %457 = dma.vmem_to_hbm [thread:$0]  %s455, 128, %s452, %s440
        $region44: #{tpu_custom_call.1} parent=31 // pred_fallthru
          _
      $region32: #{tpu_custom_call.1} parent=5 // pred_fallthru
        _
      %p458 = scmp.le.s32.totalorder 2, %s16
      // Predicated region
      $region45: #{tpu_custom_call.1} parent=5 // pred_check
        %p459 = pneg %p458
      $region46: #{tpu_custom_call.1} parent=5 // pred_check_branch
        %461 = sbr.rel (%p459) target = $region48
      $region47: #{tpu_custom_call.1} parent=5 // pred_region
        %s462 = ssub.s32 %s16, 2
        // Predicated region
        $region49: #{tpu_custom_call.1} parent=47 // pred_check
          %p463 = pneg %p137
        $region50: #{tpu_custom_call.1} parent=47 // pred_check_branch
          %465 = sbr.rel (%p463) target = $region52
        $region51: #{tpu_custom_call.1} parent=47 // pred_region
          %s466 = sand.u32 %s122, 1
          %s467 = scalar_lea.sflag [#allocation4], %s466
          %s468 = sand.u32 %s122, 1
          %s469 = smul.addr %s468, 8
          %s470 = scalar_lea.vmem [#allocation7], %s469
          %471 = dma.done %s467, 128
        $region52: #{tpu_custom_call.1} parent=47 // pred_fallthru
          _
      $region48: #{tpu_custom_call.1} parent=5 // pred_fallthru
        _
    $region6: #{tpu_custom_call.1} parent=1 // loop_footer
      %s20 = sadd.s32 1, %s16
    $region7: #{tpu_custom_call.1} parent=1 // loop_footer_branch
      %15 = sbr.rel target = $region3
    $region8: #{tpu_custom_call.1} parent=1 // loop_exit
      _
    %472 = vsyncpa [#allocation3], 1
    %s473 = scalar_lea.sflag [#allocation3], 1
    %474 = vsyncpa %s473, 1
    %475 = vsyncpa [#allocation6], 1
    %476 = vsyncpa [#allocation4], 1
    %s477 = scalar_lea.sflag [#allocation4], 1
    %478 = vsyncpa %s477, 1

</llo_original>
